<compile_context>
chip_gen: v5e
topology: v5e:2x2
jax: 0.10.0
libtpu: 0.0.40
codegen_flags: <defaults>
</compile_context>

<pallas_src>
import jax
import jax.numpy as jnp
from jax.experimental import pallas as pl
from jax.experimental.pallas import tpu as pltpu

_LANE = 128


def _gate_kernel(x_ref, gc_ref, wc_ref, bc_ref, o_ref):
    """Fused csSE gating for one (Bt, C, THW) tile.

    x_ref : (Bt, C, THW) input tile (native dtype)
    gc_ref: (Bt, C, 1)   precomputed per-channel cSE gate (f32, in (0,1))
    wc_ref: (1,  C, 1)   1x1-conv weight column (f32)
    bc_ref: (1,  1, 1)   1x1-conv bias (f32)
    o_ref : (Bt, C, THW) output tile (io dtype)
    """
    x = x_ref[...]                                           # (Bt, C, T) native dtype
    # sSE pre-activation: multiply promotes to f32 (weight is f32), so the
    # channel reduction (sublane/XLU) accumulates in f32.
    q = jnp.sum(x * wc_ref[...], axis=1, keepdims=True) + bc_ref[...]   # (Bt,1,T) f32
    g_s = jax.nn.sigmoid(q)                                  # f32, EUP

    # Gating multiplies + max in the input dtype (bf16-packed vregs on v6e/v7x
    # when activations are bf16; plain f32 otherwise). Direct max of the two
    # products — cheaper on the VPU than the sign-aware select form.
    dt = x.dtype
    cse = x * gc_ref[...].astype(dt)
    sse = x * g_s.astype(dt)
    o_ref[...] = jnp.maximum(cse, sse).astype(o_ref.dtype)


def _vmem_limit_bytes():
    """Generation-aware scoped-VMEM limit (leave ~16 MiB headroom)."""
    try:
        cap = int(pltpu.get_tpu_info().vmem_capacity_bytes)
    except Exception:
        cap = 64 << 20        # conservative fallback (v7x physical)
    return max(32 << 20, min(cap - (16 << 20), 112 << 20))


def _choose_tiles(B, C, HW, itemsize, target_bytes):
    """Pick (batch_tile, spatial_tile) so each x block is ~target_bytes and the
    grid has >=2 steps when the problem allows it (v7x megacore)."""
    per_lane = max(1, C * itemsize)
    want_lanes = max(_LANE, target_bytes // per_lane)
    if HW <= want_lanes:
        thw = HW                                   # full spatial extent (always legal)
    else:
        thw = max(_LANE, (want_lanes // _LANE) * _LANE)      # multiple of 128
    per_b = max(1, C * thw * itemsize)
    bt = max(1, min(B, target_bytes // per_b))

    def n_steps(bt_, thw_):
        return -(-B // bt_) * (-(-HW // thw_))

    if n_steps(bt, thw) < 2:
        if B >= 2:
            bt = max(1, B // 2)                    # split over batch -> >=2 steps
        elif HW >= 2 * _LANE:
            thw = max(_LANE, ((HW // 2) // _LANE) * _LANE)   # split over HW
        # else: tiny single-block problem; one TC is fine.
    return int(bt), int(thw)


def channel_spatial_se(x_nchw, w1, b1, w2, b2, w_conv, b_conv, *,
                       io_dtype=None):
    """csSE forward.  x_nchw: (B, C, H, W).  Params use PyTorch shapes:
    fc1.weight (Cr, C), fc1.bias (Cr,), fc2.weight (C, Cr), fc2.bias (C,),
    conv.weight flattened to (1, C), conv.bias (1,)."""
    B, C, H, W = x_nchw.shape
    HW = H * W
    io_dtype = x_nchw.dtype if io_dtype is None else io_dtype

    # ---- cSE gate pre-pass (tiny; plain XLA, f32 accumulation, no f32 copy) --
    x_flat = x_nchw.reshape(B, C, HW)                                  # view only
    s = jnp.mean(x_flat, axis=2, dtype=jnp.float32)                    # (B, C)
    h = jax.nn.relu(s @ w1.astype(jnp.float32).T + b1.astype(jnp.float32))
    g_c = jax.nn.sigmoid(h @ w2.astype(jnp.float32).T + b2.astype(jnp.float32))
    g_c = g_c.reshape(B, C, 1).astype(jnp.float32)                     # (B, C, 1)

    # ---- main fused gating kernel (memory-bound; tiled over B and HW) -------
    x_itemsize = jnp.dtype(x_nchw.dtype).itemsize
    out_itemsize = jnp.dtype(io_dtype).itemsize
    vmem_limit = _vmem_limit_bytes()
    # Budget: double-buffered input + output blocks (~4 blocks) plus the
    # lane-padded gc/w/b blocks and Mosaic scratch -> ~vmem_limit/6 per block.
    target_bytes = min(16 << 20, max(2 << 20, vmem_limit // 6))
    bt, thw = _choose_tiles(B, C, HW, max(x_itemsize, out_itemsize), target_bytes)
    grid = (pl.cdiv(B, bt), pl.cdiv(HW, thw))

    wc_col = w_conv.reshape(1, C, 1).astype(jnp.float32)
    bc = b_conv.reshape(1, 1, 1).astype(jnp.float32)

    cost = pl.CostEstimate(
        flops=int(5 * B * C * HW),
        transcendentals=int(B * HW),
        bytes_accessed=int(B * C * HW * (x_itemsize + out_itemsize) + B * C * 4),
    )

    out = pl.pallas_call(
        _gate_kernel,
        out_shape=jax.ShapeDtypeStruct((B, C, HW), io_dtype),
        grid_spec=pltpu.PrefetchScalarGridSpec(
            num_scalar_prefetch=0,
            grid=grid,
            in_specs=[
                pl.BlockSpec((bt, C, thw), lambda b, t: (b, 0, t)),   # x tile
                pl.BlockSpec((bt, C, 1),   lambda b, t: (b, 0, 0)),   # cSE gate
                pl.BlockSpec((1, C, 1),    lambda b, t: (0, 0, 0)),   # conv w
                pl.BlockSpec((1, 1, 1),    lambda b, t: (0, 0, 0)),   # conv b
            ],
            out_specs=pl.BlockSpec((bt, C, thw), lambda b, t: (b, 0, t)),
        ),
        compiler_params=pltpu.CompilerParams(
            dimension_semantics=("parallel", "parallel"),
            vmem_limit_bytes=int(vmem_limit)),
        cost_estimate=cost,
    )(x_flat, g_c, wc_col, bc)

    return out.reshape(B, C, H, W)


def _reference(x, w1, b1, w2, b2, w_conv, b_conv):
    """Pure-JAX reference mirroring the PyTorch csSE forward."""
    B, C, H, W = x.shape
    s = x.reshape(B, C, -1).mean(axis=2)                       # (B, C)
    h = jax.nn.relu(s @ w1.T + b1)                             # (B, Cr)
    g_c = jax.nn.sigmoid(h @ w2.T + b2)                        # (B, C)
    cse = x * g_c[:, :, None, None]
    q = jnp.einsum('bchw,c->bhw', x, w_conv.reshape(-1)) + b_conv.reshape(())
    g_s = jax.nn.sigmoid(q)                                    # (B, H, W)
    sse = x * g_s[:, None, :, :]
    return jnp.maximum(cse, sse)


if __name__ == "__main__":
    B, C, H, W = 2, 4, 16, 16
    reduction_ratio = 2
    Cr = C // reduction_ratio

    key = jax.random.PRNGKey(0)
    k = jax.random.split(key, 7)
    x = jax.random.normal(k[0], (B, C, H, W), dtype=jnp.float32)

    # Deterministic synthetic parameters (PyTorch shapes).
    w1 = jax.random.normal(k[1], (Cr, C), dtype=jnp.float32) * 0.5
    b1 = jax.random.normal(k[2], (Cr,), dtype=jnp.float32) * 0.1
    w2 = jax.random.normal(k[3], (C, Cr), dtype=jnp.float32) * 0.5
    b2 = jax.random.normal(k[4], (C,), dtype=jnp.float32) * 0.1
    w_conv = jax.random.normal(k[5], (1, C), dtype=jnp.float32) * 0.5
    b_conv = jax.random.normal(k[6], (1,), dtype=jnp.float32) * 0.1

    # f32 I/O path (bit-faithful to the PyTorch module).
    out = channel_spatial_se(x, w1, b1, w2, b2, w_conv, b_conv)
    out = jax.block_until_ready(out)
    ref = _reference(x, w1, b1, w2, b2, w_conv, b_conv)
    assert out.shape == (B, C, H, W)
    assert jnp.allclose(out, ref, atol=1e-5, rtol=1e-5)

    # bf16 output path (halves output HBM traffic; input stays native dtype —
    # no extra convert pass is created).
    out_bf16 = channel_spatial_se(x, w1, b1, w2, b2, w_conv, b_conv,
                                  io_dtype=jnp.bfloat16)
    out_bf16 = jax.block_until_ready(out_bf16)
    assert out_bf16.shape == (B, C, H, W)
    assert jnp.allclose(out_bf16.astype(jnp.float32), ref, atol=1e-1, rtol=1e-1)

    print("KERNEL_OK")
</pallas_src>

<mosaic_0001>
module attributes {stable_mosaic.version = 11 : i64} {
  func.func @_gate_kernel(%arg0: i32, %arg1: i32, %arg2: memref<1x4x256xf32, #tpu.memory_space<vmem>>, %arg3: memref<1x4x1xf32, #tpu.memory_space<vmem>>, %arg4: memref<1x4x1xf32, #tpu.memory_space<vmem>>, %arg5: memref<1x1x1xf32, #tpu.memory_space<vmem>>, %arg6: memref<1x4x256xf32, #tpu.memory_space<vmem>>) attributes {dimension_semantics = [#tpu.dimension_semantics<parallel>, #tpu.dimension_semantics<parallel>], iteration_bounds = array<i64: 2, 1>, scalar_prefetch = 0 : i64, scratch_operands = 0 : i64, tpu.core_type = #tpu.core_type<tc>, window_params = [{transform_indices = @transform_0, window_bounds = array<i64: 1, 4, 256>}, {transform_indices = @transform_1, window_bounds = array<i64: 1, 4, 1>}, {pipeline_mode = #tpu.pipeline_mode<synchronous>, transform_indices = @transform_2, window_bounds = array<i64: 1, 4, 1>}, {pipeline_mode = #tpu.pipeline_mode<synchronous>, transform_indices = @transform_3, window_bounds = array<i64: 1, 1, 1>}, {transform_indices = @transform_4, window_bounds = array<i64: 1, 4, 256>}]} {
    %c0 = arith.constant 0 : index
    %c0_0 = arith.constant 0 : index
    %c0_1 = arith.constant 0 : index
    %0 = vector.load %arg2[%c0, %c0_0, %c0_1] : memref<1x4x256xf32, #tpu.memory_space<vmem>>, vector<1x4x256xf32>
    %c0_2 = arith.constant 0 : index
    %c0_3 = arith.constant 0 : index
    %c0_4 = arith.constant 0 : index
    %1 = vector.load %arg4[%c0_2, %c0_3, %c0_4] : memref<1x4x1xf32, #tpu.memory_space<vmem>>, vector<1x4x1xf32>
    %2 = vector.broadcast %1 : vector<1x4x1xf32> to vector<1x4x256xf32>
    %3 = arith.mulf %0, %2 : vector<1x4x256xf32>
    %cst = arith.constant dense<0.000000e+00> : vector<1x256xf32>
    %4 = vector.multi_reduction <add>, %3, %cst [1] : vector<1x4x256xf32> to vector<1x256xf32>
    %5 = vector.shape_cast %4 : vector<1x256xf32> to vector<1x1x256xf32>
    %c0_5 = arith.constant 0 : index
    %c0_6 = arith.constant 0 : index
    %c0_7 = arith.constant 0 : index
    %6 = vector.load %arg5[%c0_5, %c0_6, %c0_7] : memref<1x1x1xf32, #tpu.memory_space<vmem>>, vector<1x1x1xf32>
    %7 = vector.broadcast %6 : vector<1x1x1xf32> to vector<1x1x256xf32>
    %8 = arith.addf %5, %7 : vector<1x1x256xf32>
    %9 = arith.negf %8 : vector<1x1x256xf32>
    %10 = math.exp %9 : vector<1x1x256xf32>
    %cst_8 = arith.constant 1.000000e+00 : f32
    %11 = vector.broadcast %cst_8 : f32 to vector<1x1x256xf32>
    %12 = arith.addf %11, %10 : vector<1x1x256xf32>
    %13 = arith.divf %11, %12 : vector<1x1x256xf32>
    %c0_9 = arith.constant 0 : index
    %c0_10 = arith.constant 0 : index
    %c0_11 = arith.constant 0 : index
    %14 = vector.load %arg3[%c0_9, %c0_10, %c0_11] : memref<1x4x1xf32, #tpu.memory_space<vmem>>, vector<1x4x1xf32>
    %15 = vector.broadcast %14 : vector<1x4x1xf32> to vector<1x4x256xf32>
    %16 = arith.mulf %0, %15 : vector<1x4x256xf32>
    %17 = vector.broadcast %13 : vector<1x1x256xf32> to vector<1x4x256xf32>
    %18 = arith.mulf %0, %17 : vector<1x4x256xf32>
    %19 = arith.maximumf %16, %18 : vector<1x4x256xf32>
    %c0_12 = arith.constant 0 : index
    %c0_13 = arith.constant 0 : index
    %c0_14 = arith.constant 0 : index
    %20 = vector.load %arg6[%c0_12, %c0_13, %c0_14] : memref<1x4x256xf32, #tpu.memory_space<vmem>>, vector<1x4x256xf32>
    tpu.vector_store %arg6[%c0_12, %c0_13, %c0_14], %19 {strides = array<i32>} : memref<1x4x256xf32, #tpu.memory_space<vmem>>, vector<1x4x256xf32>,
    return
  }
  func.func @transform_0(%arg0: i32, %arg1: i32) -> (i32, i32, i32) {
    %c0_i32 = arith.constant 0 : i32
    %c0_i32_0 = arith.constant 0 : i32
    return %arg0, %c0_i32, %arg1 : i32, i32, i32
  }
  func.func @transform_1(%arg0: i32, %arg1: i32) -> (i32, i32, i32) {
    %c0_i32 = arith.constant 0 : i32
    %c0_i32_0 = arith.constant 0 : i32
    %c0_i32_1 = arith.constant 0 : i32
    return %arg0, %c0_i32, %c0_i32_0 : i32, i32, i32
  }
  func.func @transform_2(%arg0: i32, %arg1: i32) -> (i32, i32, i32) {
    %c0_i32 = arith.constant 0 : i32
    %c0_i32_0 = arith.constant 0 : i32
    %c0_i32_1 = arith.constant 0 : i32
    %c0_i32_2 = arith.constant 0 : i32
    return %c0_i32, %c0_i32_0, %c0_i32_1 : i32, i32, i32
  }
  func.func @transform_3(%arg0: i32, %arg1: i32) -> (i32, i32, i32) {
    %c0_i32 = arith.constant 0 : i32
    %c0_i32_0 = arith.constant 0 : i32
    %c0_i32_1 = arith.constant 0 : i32
    %c0_i32_2 = arith.constant 0 : i32
    return %c0_i32, %c0_i32_0, %c0_i32_1 : i32, i32, i32
  }
  func.func @transform_4(%arg0: i32, %arg1: i32) -> (i32, i32, i32) {
    %c0_i32 = arith.constant 0 : i32
    %c0_i32_0 = arith.constant 0 : i32
    return %arg0, %c0_i32, %arg1 : i32, i32, i32
  }
}

</mosaic_0001>

<llo_original>
// kernel: tpu_custom_call.1
$region0: #{tpu_custom_call.1}
  #allocation0 [shape = 'u32[]', space=smem, size = 0x4, offset = 0x4, fixed_abs, tag = 'smem constant byte address 0x4 - core index']
  #allocation1 [shape = 'u32[72,128]{1,0:T(1,128)}', space=vmem, size = 0x9000, scoped, tag = 'internal scratch']
  #allocation2 [shape = 'f32[1,1,1]{2,1,0:T(1,128)S(1)}', space=vmem, size = 0x200, scoped, tag = 'scoped memory for tpu_custom_call.1']
  %s0 = inlined_call_operand.vmem [shape: f32[2,4,256], index: 0, kind: input, shape index: {}]
  %s1 = inlined_call_operand.vmem [shape: f32[2,4,1], index: 1, kind: input, shape index: {}]
  %s2 = inlined_call_operand.vmem [shape: f32[1,4,1], index: 2, kind: input, shape index: {}]
  %s3 = inlined_call_operand.<no memory space> [shape: f32[1,1,1], index: 3, kind: input, shape index: {}]
  %s4 = inlined_call_operand.hbm [shape: f32[2,4,256], index: 4, kind: output, shape index: {}]
  %s5 = sld [smem:[#allocation0]]
  $region49: #{tpu_custom_call.1} parent=0
    _
  %s7 = ssub.s32 1, %s5
  %s8 = scalar_select 0, %s7, %s5
  %v9 = vstv %s3
  %10 = vst [vmem:[#allocation2] sm:$0x1] %v9
  $region1: #{tpu_custom_call.1} parent=0
    #allocation3 [shape = 'u8[8192]{0}', space=vmem, size = 0x2000, scoped, tag = 'output window, operand 0']
    #allocation4 [shape = 's32[2]{0}', space=sflag, size = 0x8, scoped, tag = 'scoped memory for tpu_custom_call.1']
    %11 = vsyncpa [#allocation4], 0
    %s12 = scalar_lea.sflag [#allocation4], 1
    %13 = vsyncpa %s12, 0
    loop: start=0, step=1, limit=4
    $region2: #{tpu_custom_call.1} parent=1 // loop_pre_header
      _
    $region3: #{tpu_custom_call.1} parent=1 // loop_header
      %s15 = sphi 0, %s19
      %p16 = scmp.ge.s32.totalorder %s15, 4
      %s22 = sphi 0, %s34
      %s23 = sphi 0, %s30
      %s24 = sphi 0, %s22
      %s25 = sphi 0, %s23
      %s26 = sphi 0, %s24
      %s27 = sphi 0, %s25
      %s39 = sphi 0, %s41
      %s42 = sphi 0, %s39
      %s43 = sphi 0, %s42
      %s59 = sphi 0, %s43
      %s65 = sphi 0, %s67
      %s68 = sphi 0, %s65
      %s69 = sphi 0, %s68
      %s85 = sphi 0, %s69
      %s89 = sphi 0, %s89
      %s91 = sphi 0, %s89
      %s92 = sphi 0, %s91
      %s106 = sphi 0, %s92
      %s110 = sphi 0, %s110
      %s112 = sphi 0, %s110
      %s113 = sphi 0, %s112
      %s127 = sphi 0, %s113
      %s135 = sphi 0, %s137
      %s138 = sphi 0, %s135
      %s139 = sphi 0, %s138
      %s155 = sphi 0, %s139
    $region4: #{tpu_custom_call.1} parent=1 // loop_header_branch
      %18 = sbr.rel (%p16) target = $region8
    $region5: #{tpu_custom_call.1} parent=1 // loop_body
      %s20 = ssub.s32 %s15, 1
      %s21 = ssub.s32 %s15, 2
      %s28 = sadd.s32 1, %s23
      %p29 = scmp.ge.s32.totalorder %s28, 1
      %s30 = scalar_select %p29, 0, %s28
      %s31 = sadd.s32 1, %s22
      %s32 = scalar_select %p29, %s31, %s22
      %p33 = scmp.ge.s32.totalorder %s32, 2
      %s34 = scalar_select %p33, 0, %s32
      %s35 = ssub.s32 %s22, %s34
      %s36 = ssub.s32 %s23, %s30
      %s37 = sor.u32 %s35, %s36
      %p38 = scmp.eq.s32.totalorder %s37, 0
      %s40 = sadd.s32 %s39, 1
      %s41 = scalar_select %p38, %s39, %s40
      %p44 = pneg %p38
      %p45 = scmp.eq.s32.totalorder %s15, 1
      %p46 = por %p44, %p45
      %p47 = scmp.ne.s32.totalorder %s39, %s42
      %p48 = scmp.eq.s32.totalorder %s15, 0
      %p49 = por %p47, %p48
      %p50 = scmp.ne.s32.totalorder %s39, %s42
      %p51 = scmp.eq.s32.totalorder %s20, 1
      %p52 = por %p50, %p51
      %p53 = scmp.ne.s32.totalorder %s42, %s43
      %p54 = scmp.eq.s32.totalorder %s20, 0
      %p55 = por %p53, %p54
      %p56 = scmp.ne.s32.totalorder %s42, %s43
      %p57 = scmp.eq.s32.totalorder %s21, 1
      %p58 = por %p56, %p57
      %p60 = scmp.ne.s32.totalorder %s43, %s59
      %p61 = scmp.eq.s32.totalorder %s21, 0
      %p62 = por %p60, %p61
      %s63 = ssub.s32 %s22, %s34
      %p64 = scmp.eq.s32.totalorder %s63, 0
      %s66 = sadd.s32 %s65, 1
      %s67 = scalar_select %p64, %s65, %s66
      %p70 = pneg %p64
      %p71 = scmp.eq.s32.totalorder %s15, 1
      %p72 = por %p70, %p71
      %p73 = scmp.ne.s32.totalorder %s65, %s68
      %p74 = scmp.eq.s32.totalorder %s15, 0
      %p75 = por %p73, %p74
      %p76 = scmp.ne.s32.totalorder %s65, %s68
      %p77 = scmp.eq.s32.totalorder %s20, 1
      %p78 = por %p76, %p77
      %p79 = scmp.ne.s32.totalorder %s68, %s69
      %p80 = scmp.eq.s32.totalorder %s20, 0
      %p81 = por %p79, %p80
      %p82 = scmp.ne.s32.totalorder %s68, %s69
      %p83 = scmp.eq.s32.totalorder %s21, 1
      %p84 = por %p82, %p83
      %p86 = scmp.ne.s32.totalorder %s69, %s85
      %p87 = scmp.eq.s32.totalorder %s21, 0
      %p88 = por %p86, %p87
      %s90 = sadd.s32 %s89, 1
      %p93 = scmp.eq.s32.totalorder %s15, 1
      %p94 = scmp.ne.s32.totalorder %s89, %s91
      %p95 = scmp.eq.s32.totalorder %s15, 0
      %p96 = por %p94, %p95
      %p97 = scmp.ne.s32.totalorder %s89, %s91
      %p98 = scmp.eq.s32.totalorder %s20, 1
      %p99 = por %p97, %p98
      %p100 = scmp.ne.s32.totalorder %s91, %s92
      %p101 = scmp.eq.s32.totalorder %s20, 0
      %p102 = por %p100, %p101
      %p103 = scmp.ne.s32.totalorder %s91, %s92
      %p104 = scmp.eq.s32.totalorder %s21, 1
      %p105 = por %p103, %p104
      %p107 = scmp.ne.s32.totalorder %s92, %s106
      %p108 = scmp.eq.s32.totalorder %s21, 0
      %p109 = por %p107, %p108
      %s111 = sadd.s32 %s110, 1
      %p114 = scmp.eq.s32.totalorder %s15, 1
      %p115 = scmp.ne.s32.totalorder %s110, %s112
      %p116 = scmp.eq.s32.totalorder %s15, 0
      %p117 = por %p115, %p116
      %p118 = scmp.ne.s32.totalorder %s110, %s112
      %p119 = scmp.eq.s32.totalorder %s20, 1
      %p120 = por %p118, %p119
      %p121 = scmp.ne.s32.totalorder %s112, %s113
      %p122 = scmp.eq.s32.totalorder %s20, 0
      %p123 = por %p121, %p122
      %p124 = scmp.ne.s32.totalorder %s112, %s113
      %p125 = scmp.eq.s32.totalorder %s21, 1
      %p126 = por %p124, %p125
      %p128 = scmp.ne.s32.totalorder %s113, %s127
      %p129 = scmp.eq.s32.totalorder %s21, 0
      %p130 = por %p128, %p129
      %s131 = ssub.s32 %s22, %s34
      %s132 = ssub.s32 %s23, %s30
      %s133 = sor.u32 %s131, %s132
      %p134 = scmp.eq.s32.totalorder %s133, 0
      %s136 = sadd.s32 %s135, 1
      %s137 = scalar_select %p134, %s135, %s136
      %p140 = pneg %p134
      %p141 = scmp.eq.s32.totalorder %s15, 1
      %p142 = por %p140, %p141
      %p143 = scmp.ne.s32.totalorder %s135, %s138
      %p144 = scmp.eq.s32.totalorder %s15, 0
      %p145 = por %p143, %p144
      %p146 = scmp.ne.s32.totalorder %s135, %s138
      %p147 = scmp.eq.s32.totalorder %s20, 1
      %p148 = por %p146, %p147
      %p149 = scmp.ne.s32.totalorder %s138, %s139
      %p150 = scmp.eq.s32.totalorder %s20, 0
      %p151 = por %p149, %p150
      %p152 = scmp.ne.s32.totalorder %s138, %s139
      %p153 = scmp.eq.s32.totalorder %s21, 1
      %p154 = por %p152, %p153
      %p156 = scmp.ne.s32.totalorder %s139, %s155
      %p157 = scmp.eq.s32.totalorder %s21, 0
      %p158 = por %p156, %p157
      %p159 = scmp.le.s32.totalorder 1, %s15
      %p160 = scmp.lt.s32.totalorder %s15, 3
      %p161 = pnand %p159, %p160
      %p162 = pneg %p161
      // Predicated region
      $region9: #{tpu_custom_call.1} parent=5 // pred_check
        _
      $region10: #{tpu_custom_call.1} parent=5 // pred_check_branch
        %164 = sbr.rel (%p161) target = $region12
      $region11: #{tpu_custom_call.1} parent=5 // pred_region
        %s165 = ssub.s32 %s15, 1
        // Predicated region
        $region13: #{tpu_custom_call.1} parent=11 // pred_check
          %p166 = pneg %p102
        $region14: #{tpu_custom_call.1} parent=11 // pred_check_branch
          %168 = sbr.rel (%p166) target = $region16
        $region15: #{tpu_custom_call.1} parent=11 // pred_region
          _
        $region16: #{tpu_custom_call.1} parent=11 // pred_fallthru
          _
        // Predicated region
        $region17: #{tpu_custom_call.1} parent=11 // pred_check
          %p169 = pneg %p123
        $region18: #{tpu_custom_call.1} parent=11 // pred_check_branch
          %171 = sbr.rel (%p169) target = $region20
        $region19: #{tpu_custom_call.1} parent=11 // pred_region
          _
        $region20: #{tpu_custom_call.1} parent=11 // pred_fallthru
          _
      $region12: #{tpu_custom_call.1} parent=5 // pred_fallthru
        _
      %p172 = scmp.lt.s32.totalorder %s15, 2
      // Predicated region
      $region21: #{tpu_custom_call.1} parent=5 // pred_check
        %p173 = pneg %p172
      $region22: #{tpu_custom_call.1} parent=5 // pred_check_branch
        %175 = sbr.rel (%p173) target = $region24
      $region23: #{tpu_custom_call.1} parent=5 // pred_region
        // Predicated region
        $region25: #{tpu_custom_call.1} parent=23 // pred_check
          %p176 = pneg %p49
        $region26: #{tpu_custom_call.1} parent=23 // pred_check_branch
          %178 = sbr.rel (%p176) target = $region28
        $region27: #{tpu_custom_call.1} parent=23 // pred_region
          %s179 = smul.u32 2, %s23
          %p180 = scmp.lt.s32.totalorder %s22, 1
          %s181 = scalar_select %p180, %s22, 1
          %p182 = scmp.lt.s32.totalorder %s179, 1
          %s183 = scalar_select %p182, %s179, 1
          %s184 = smul.addr %s181, 2
          %s185 = sadd.s32 %s183, %s184
          %s186 = smul.addr %s185, 4
          %s187 = scalar_lea.vmem %s0, %s186
          %s188 = smul.u32 2, %s23
        $region28: #{tpu_custom_call.1} parent=23 // pred_fallthru
          _
        // Predicated region
        $region29: #{tpu_custom_call.1} parent=23 // pred_check
          %p189 = pneg %p75
        $region30: #{tpu_custom_call.1} parent=23 // pred_check_branch
          %191 = sbr.rel (%p189) target = $region32
        $region31: #{tpu_custom_call.1} parent=23 // pred_region
          %p192 = scmp.lt.s32.totalorder %s22, 1
          %s193 = scalar_select %p192, %s22, 1
          %s194 = smul.addr %s193, 4
          %s195 = scalar_lea.vmem %s1, %s194
        $region32: #{tpu_custom_call.1} parent=23 // pred_fallthru
          _
      $region24: #{tpu_custom_call.1} parent=5 // pred_fallthru
        _
      %p196 = scmp.le.s32.totalorder 1, %s15
      %p197 = scmp.lt.s32.totalorder %s15, 3
      %p198 = pnand %p196, %p197
      %p199 = pneg %p198
      // Predicated region
      $region33: #{tpu_custom_call.1} parent=5 // pred_check
        _
      $region34: #{tpu_custom_call.1} parent=5 // pred_check_branch
        %201 = sbr.rel (%p198) target = $region36
      $region35: #{tpu_custom_call.1} parent=5 // pred_region
        %s202 = ssub.s32 %s15, 1
        %s203 = smul.u32 2, %s25
        %p204 = scmp.lt.s32.totalorder %s24, 1
        %s205 = scalar_select %p204, %s24, 1
        %p206 = scmp.lt.s32.totalorder %s203, 1
        %s207 = scalar_select %p206, %s203, 1
        %s208 = smul.addr %s205, 2
        %s209 = sadd.s32 %s207, %s208
        %s210 = smul.addr %s209, 4
        %s211 = scalar_lea.vmem %s0, %s210
        %p212 = pneg %p55
        %p213 = pneg %p52
        %p214 = scmp.lt.s32.totalorder %s24, 1
        %s215 = scalar_select %p214, %s24, 1
        %s216 = smul.addr %s215, 4
        %s217 = scalar_lea.vmem %s1, %s216
        %p218 = pneg %p81
        %p219 = pneg %p78
        %p220 = pneg %p102
        %p221 = pneg %p99
        %p222 = pneg %p123
        %p223 = pneg %p120
        %p224 = pneg %p151
        %p225 = pneg %p148
        %s226 = sand.u32 %s138, 1
        %s227 = scalar_lea.sflag [#allocation4], %s226
        %s228 = sand.u32 %s138, 1
        %s229 = smul.addr %s228, 8
        %s230 = scalar_lea.vmem [#allocation3], %s229
        %s231 = smul.u32 2, %s25
        %p232 = scmp.lt.s32.totalorder %s24, 1
        %s233 = scalar_select %p232, %s24, 1
        %p234 = scmp.lt.s32.totalorder %s231, 1
        %s235 = scalar_select %p234, %s231, 1
        %s236 = smul.addr %s233, 2
        %s237 = sadd.s32 %s235, %s236
        %s238 = smul.addr %s237, 4
        %s239 = scalar_lea.vmem %s0, %s238
        %s240 = smul.u32 2, %s25
        %p241 = scmp.lt.s32.totalorder %s24, 1
        %s242 = scalar_select %p241, %s24, 1
        %s243 = smul.addr %s242, 4
        %s244 = scalar_lea.vmem %s1, %s243
        %s245 = smul.u32 2, %s25
        %v246 = vld [vmem:[%s239] sm:$0xff]
        %v247 = vld [vmem:[%s2] sm:$0xf]
        %249 = vset.pattern.permute.xlu0 0
        %250 = vperm.xlu0 %249, %v247
        %v251 = vpop.permute.xlu0 %250
        %v253 = vunpack.c.l.s4 839922192
        %v254 = vunpack.c.0.s8 %v253
        %v255 = vperm.slane %v251, %v254
        %v257 = vmul.f32 %v246, %v255
        %259 = vst [vmem:[#allocation1] ss:$2 sm:$0xff] %v257
        %v260 = vld.sshfl [vmem:[#allocation1] sm:$0xff pattern:$0x75316420]
        %v261 = vld.sshfl [vmem:[#allocation1 + $0x8] sm:$0xff pattern:$0x75316420]
        %vm264 = vcmask 1043456
        %v265 = vsel %vm264, %v260, 0.0
        %v266 = vrot.slane %v265, 4
        %v267 = vadd.f32 %v265, %v266
        %v268 = vrot.slane %v267, 2
        %v269 = vadd.f32 %v267, %v268
        %v270 = vrot.slane %v269, 1
        %v271 = vadd.f32 %v269, %v270
        %v272 = vsel %vm264, %v261, 0.0
        %v273 = vrot.slane %v272, 4
        %v274 = vadd.f32 %v272, %v273
        %v275 = vrot.slane %v274, 2
        %v276 = vadd.f32 %v274, %v275
        %v277 = vrot.slane %v276, 1
        %v278 = vadd.f32 %v276, %v277
        %v279 = vld [vmem:[#allocation2] sm:$0x1]
        %281 = vset.pattern.permute.xlu0 0
        %282 = vperm.xlu0 %281, %v279
        %v283 = vpop.permute.xlu0 %282
        %v285 = vperm.slane %v283, 0
        %v286 = vadd.f32 %v271, %v285
        %v287 = vadd.f32 %v278, %v285
        %v288 = vxor.u32 %v286, 2147483648
        %v289 = vxor.u32 %v287, 2147483648
        %v290 = vmul.f32 %v288, 1.442695
        %v291 = vpow.pop %v290
        %v292 = vmul.f32 %v289, 1.442695
        %v293 = vpow.pop %v292
        %v294 = vadd.f32 %v291, 1.0
        %v295 = vadd.f32 %v293, 1.0
        %v296 = vrcp.pop %v294
        %v297 = vmul.f32 %v294, %v296
        %v298 = vsub.f32 1.0, %v297
        %v299 = vmul.f32 %v296, %v298
        %v300 = vadd.f32 %v296, %v299
        %vm301 = vweird.f32 %v294
        %vm302 = vweird.f32 %v296
        %vm303 = vmor %vm301, %vm302
        %v304 = vsel %vm303, %v296, %v300
        %v305 = vand.u32 2147483647, %v294
        %vm306 = vcmp.eq.f32.partialorder %v305, 8.507059e+37
        %v307 = vand.u32 %v294, 2147483648
        %v308 = vor.u32 1.1754944e-38, %v307
        %v309 = vsel %vm306, %v308, %v304
        %v310 = vmul.f32 1.0, %v309
        %v311 = vrcp.pop %v295
        %v312 = vmul.f32 %v295, %v311
        %v313 = vsub.f32 1.0, %v312
        %v314 = vmul.f32 %v311, %v313
        %v315 = vadd.f32 %v311, %v314
        %vm316 = vweird.f32 %v295
        %vm317 = vweird.f32 %v311
        %vm318 = vmor %vm316, %vm317
        %v319 = vsel %vm318, %v311, %v315
        %v320 = vand.u32 2147483647, %v295
        %vm321 = vcmp.eq.f32.partialorder %v320, 8.507059e+37
        %v322 = vand.u32 %v295, 2147483648
        %v323 = vor.u32 1.1754944e-38, %v322
        %v324 = vsel %vm321, %v323, %v319
        %v325 = vmul.f32 1.0, %v324
        %v326 = vld [vmem:[%s244] sm:$0xf]
        %328 = vset.pattern.permute.xlu0 0
        %329 = vperm.xlu0 %328, %v326
        %v330 = vpop.permute.xlu0 %329
        %v332 = vunpack.c.l.s4 839922192
        %v333 = vunpack.c.0.s8 %v332
        %v334 = vperm.slane %v330, %v333
        %v336 = vmul.f32 %v246, %v334
        %v339 = vrot.slane %v325, 4
        %v340 = vsel %vm264, %v310, %v339
        %v342 = vmul.f32 %v246, %v340
        %v343 = vmax.f32 %v336, %v342
        %344 = vst [vmem:[%s230] sm:$0xff] %v343
        %s345 = sand.u32 %s138, 1
        %s346 = scalar_lea.sflag [#allocation4], %s345
        %s347 = sand.u32 %s138, 1
        %s348 = smul.addr %s347, 8
        %s349 = scalar_lea.vmem [#allocation3], %s348
        // Predicated region
        $region37: #{tpu_custom_call.1} parent=35 // pred_check
          %p350 = pneg %p148
        $region38: #{tpu_custom_call.1} parent=35 // pred_check_branch
          %352 = sbr.rel (%p350) target = $region40
        $region39: #{tpu_custom_call.1} parent=35 // pred_region
          %s353 = smul.u32 2, %s25
          %355 = vsyncadd %s346, 0
          %s356 = smul.addr %s24, 2
          %s357 = sadd.s32 %s353, %s356
          %s358 = smul.addr %s357, 4
          %s359 = scalar_lea.hbm %s4, %s358
          %s361 = sshll.u32 %s349, 4
          %s362 = int_to_ptr.vmem [resolvable:$true] %s361
          %s363 = sshll.u32 %s359, 4
          %s364 = int_to_ptr.hbm [resolvable:$true] %s363
          %366 = dma.vmem_to_hbm [thread:$0]  %s362, 128, %s364, %s346
        $region40: #{tpu_custom_call.1} parent=35 // pred_fallthru
          _
      $region36: #{tpu_custom_call.1} parent=5 // pred_fallthru
        _
      %p367 = scmp.le.s32.totalorder 2, %s15
      // Predicated region
      $region41: #{tpu_custom_call.1} parent=5 // pred_check
        %p368 = pneg %p367
      $region42: #{tpu_custom_call.1} parent=5 // pred_check_branch
        %370 = sbr.rel (%p368) target = $region44
      $region43: #{tpu_custom_call.1} parent=5 // pred_region
        %s371 = ssub.s32 %s15, 2
        // Predicated region
        $region45: #{tpu_custom_call.1} parent=43 // pred_check
          %p372 = pneg %p154
        $region46: #{tpu_custom_call.1} parent=43 // pred_check_branch
          %374 = sbr.rel (%p372) target = $region48
        $region47: #{tpu_custom_call.1} parent=43 // pred_region
          %s375 = sand.u32 %s139, 1
          %s376 = scalar_lea.sflag [#allocation4], %s375
          %s377 = sand.u32 %s139, 1
          %s378 = smul.addr %s377, 8
          %s379 = scalar_lea.vmem [#allocation3], %s378
          %381 = dma.done %s376, 128
        $region48: #{tpu_custom_call.1} parent=43 // pred_fallthru
          _
      $region44: #{tpu_custom_call.1} parent=5 // pred_fallthru
        _
    $region6: #{tpu_custom_call.1} parent=1 // loop_footer
      %s19 = sadd.s32 1, %s15
    $region7: #{tpu_custom_call.1} parent=1 // loop_footer_branch
      %14 = sbr.rel target = $region3
    $region8: #{tpu_custom_call.1} parent=1 // loop_exit
      _
    %382 = vsyncpa [#allocation4], 1
    %s383 = scalar_lea.sflag [#allocation4], 1
    %384 = vsyncpa %s383, 1

</llo_original>
